<compile_context>
chip_gen: v7x
topology: tpu7x:2x2x1
jax: 0.10.0
libtpu: 0.0.40
codegen_flags: <defaults>
</compile_context>

<pallas_src>
import jax
import jax.numpy as jnp
from jax.experimental import pallas as pl
from jax.experimental.pallas import tpu as pltpu

LEAKY_SLOPE = 0.01  # nn.LeakyReLU default negative_slope


def _leaky_relu(x):
    return jnp.where(x > 0, x, LEAKY_SLOPE * x)


def _round_up(n, m):
    return ((n + m - 1) // m) * m


def encoder_kernel(x_ref, w1_ref, b1_ref, w2_ref, b2_ref,
                   w3m_ref, b3m_ref, w3v_ref, b3v_ref, out_ref):
    """One batch tile of the fused encoder MLP.

    x_ref   : (TB, F_in) compute dtype (f32 or bf16)
    w*_ref  : weights in compute dtype; b*_ref: biases in f32, shape (1, F_out)
    out_ref : (2, TB, L) f32 -- out[0] = mean, out[1] = std
    """
    x = x_ref[...]

    # Layer 1 + LeakyReLU (MXU matmul w/ f32 accumulation, VPU activation).
    h = jnp.dot(x, w1_ref[...], preferred_element_type=jnp.float32) + b1_ref[...]
    h = _leaky_relu(h).astype(w2_ref.dtype)

    # Layer 2 + LeakyReLU.
    h = jnp.dot(h, w2_ref[...], preferred_element_type=jnp.float32) + b2_ref[...]
    h = _leaky_relu(h).astype(w3m_ref.dtype)

    # Final layer, split into the mean / logvar halves (PyTorch chunk order),
    # so we never lane-slice a matmul result at a sub-(8,128) offset.
    mean = jnp.dot(h, w3m_ref[...], preferred_element_type=jnp.float32) + b3m_ref[...]
    logvar = jnp.dot(h, w3v_ref[...], preferred_element_type=jnp.float32) + b3v_ref[...]
    std = jnp.sqrt(jnp.exp(logvar) + 1e-6)

    # Single stacked output slab (split in the wrapper) instead of two tiny
    # (TB, L) outputs -> one writeback per step.
    out_ref[0, :, :] = mean
    out_ref[1, :, :] = std


def encoder_forward(obs, params, latent_dim, *,
                    compute_dtype=jnp.float32, block_batch=256):
    """obs: (B, H, W) float32. Returns (mean, std), each (B, latent_dim) f32."""
    w1, b1, w2, b2, w3, b3 = params
    B = obs.shape[0]
    x = obs.reshape(B, -1).astype(jnp.float32)  # .flatten(1), row-major
    f_in = x.shape[1]

    # Split the last layer into mean / logvar halves in the wrapper.
    w3m, w3v = w3[:, :latent_dim], w3[:, latent_dim:]
    b3m, b3v = b3[:, :latent_dim], b3[:, latent_dim:]

    # ---- batch tile size ---------------------------------------------------
    itemsize = jnp.dtype(compute_dtype).itemsize
    # Sub-32-bit dtypes pack 2 rows per sublane -> keep windows 16-aligned.
    align = 8 if itemsize >= 4 else 16
    tb = max(align, min(_round_up(block_batch, align), _round_up(B, align)))

    weight_bytes = (sum(int(a.size) for a in (w1, w2, w3m, w3v)) * itemsize
                    + sum(int(a.size) for a in (b1, b2, b3m, b3v)) * 4)

    def _step_bytes(t):  # double-buffered x block + stacked output block
        return 2 * (t * f_in * itemsize + 2 * t * latent_dim * 4)

    # Stay well under the scoped VMEM limit (32 MiB default; 64 MiB physical
    # on v7x) so the same tiling works on v5e / v6e / v7x.
    budget = 8 * 1024 * 1024
    while tb > align and weight_bytes + _step_bytes(tb) > budget:
        tb = max(align, _round_up(tb // 2, align))

    b_pad = _round_up(B, tb)
    if b_pad != B:
        x = jnp.pad(x, ((0, b_pad - B), (0, 0)))

    # Optional bf16 inputs/weights; MXU accumulates in f32, biases stay f32.
    x_c = x.astype(compute_dtype)
    w1_c, w2_c, w3m_c, w3v_c = (w.astype(compute_dtype)
                                for w in (w1, w2, w3m, w3v))

    # Weights/biases: full-array block with a constant index_map -> DMA'd once
    # and kept VMEM-resident across the batch grid.
    resident = lambda a: pl.BlockSpec(a.shape, lambda i: (0, 0))

    out = pl.pallas_call(
        encoder_kernel,
        out_shape=jax.ShapeDtypeStruct((2, b_pad, latent_dim), jnp.float32),
        grid=(b_pad // tb,),
        in_specs=[
            pl.BlockSpec((tb, f_in), lambda i: (i, 0)),   # x: tiled over batch
            resident(w1_c), resident(b1),
            resident(w2_c), resident(b2),
            resident(w3m_c), resident(b3m),
            resident(w3v_c), resident(b3v),
        ],
        out_specs=pl.BlockSpec((2, tb, latent_dim), lambda i: (0, i, 0)),
        compiler_params=pltpu.CompilerParams(
            dimension_semantics=("parallel",)),           # megacore on v7x
    )(x_c, w1_c, b1, w2_c, b2, w3m_c, b3m, w3v_c, b3v)

    return out[0, :B], out[1, :B]


def init_params(key, obs_dim_flat, hidden_dims, latent_dim):
    """Deterministic init mimicking nn.Linear default (uniform +/- 1/sqrt(fan_in))."""
    dims = [obs_dim_flat] + hidden_dims + [latent_dim * 2]
    params = []
    for i in range(len(dims) - 1):
        key, kw, kb = jax.random.split(key, 3)
        fan_in, fan_out = dims[i], dims[i + 1]
        bound = 1.0 / jnp.sqrt(fan_in)
        w = jax.random.uniform(kw, (fan_in, fan_out), jnp.float32, -bound, bound)
        b = jax.random.uniform(kb, (1, fan_out), jnp.float32, -bound, bound)
        params += [w, b]
    return tuple(params)


def encoder_reference(obs, params, latent_dim):
    """Pure-JAX reference for correctness checking."""
    w1, b1, w2, b2, w3, b3 = params
    x = obs.reshape(obs.shape[0], -1)
    h = _leaky_relu(x @ w1 + b1)
    h = _leaky_relu(h @ w2 + b2)
    p = h @ w3 + b3
    mean, logvar = p[:, :latent_dim], p[:, latent_dim:]
    return mean, jnp.sqrt(jnp.exp(logvar) + 1e-6)


if __name__ == "__main__":
    # NOTE: at these toy sizes the kernel is launch/DMA-overhead bound (one
    # MXU tile of work); the tiling/residency structure is what matters at
    # production batch sizes.
    obs_dim = (16, 16)        # (H, W) -> obs_dim_flat = 256
    hidden_dims = [32, 32]
    latent_dim = 8
    batch = 16

    key = jax.random.PRNGKey(0)
    key, k_obs = jax.random.split(key)
    obs = jax.random.normal(k_obs, (batch, *obs_dim), jnp.float32)
    params = init_params(key, obs_dim[0] * obs_dim[1], hidden_dims, latent_dim)

    ref_mean, ref_std = encoder_reference(obs, params, latent_dim)

    # f32 path; small batch tile so the grid has >1 step and weight residency /
    # pipelining are actually exercised.
    mean, std = encoder_forward(obs, params, latent_dim,
                                compute_dtype=jnp.float32, block_batch=8)
    jax.block_until_ready((mean, std))
    assert mean.shape == (batch, latent_dim) and std.shape == (batch, latent_dim)
    assert jnp.allclose(mean, ref_mean, atol=1e-5, rtol=1e-5)
    assert jnp.allclose(std, ref_std, atol=1e-5, rtol=1e-5)

    # bf16 inputs/weights with f32 accumulation (MXU peak-rate path).
    mean_bf, std_bf = encoder_forward(obs, params, latent_dim,
                                      compute_dtype=jnp.bfloat16, block_batch=16)
    jax.block_until_ready((mean_bf, std_bf))
    assert jnp.allclose(mean_bf, ref_mean, atol=5e-2, rtol=5e-2)
    assert jnp.allclose(std_bf, ref_std, atol=5e-2, rtol=5e-2)

    print("KERNEL_OK")
</pallas_src>

<mosaic_0001>
module attributes {stable_mosaic.version = 11 : i64} {
  func.func @encoder_kernel(%arg0: i32, %arg1: memref<8x256xf32, #tpu.memory_space<vmem>>, %arg2: memref<256x32xf32, #tpu.memory_space<vmem>>, %arg3: memref<1x32xf32, #tpu.memory_space<vmem>>, %arg4: memref<32x32xf32, #tpu.memory_space<vmem>>, %arg5: memref<1x32xf32, #tpu.memory_space<vmem>>, %arg6: memref<32x8xf32, #tpu.memory_space<vmem>>, %arg7: memref<1x8xf32, #tpu.memory_space<vmem>>, %arg8: memref<32x8xf32, #tpu.memory_space<vmem>>, %arg9: memref<1x8xf32, #tpu.memory_space<vmem>>, %arg10: memref<2x8x8xf32, #tpu.memory_space<vmem>>) attributes {dimension_semantics = [#tpu.dimension_semantics<parallel>], iteration_bounds = array<i64: 2>, scalar_prefetch = 0 : i64, scratch_operands = 0 : i64, tpu.core_type = #tpu.core_type<tc>, window_params = [{transform_indices = @transform_0, window_bounds = array<i64: 8, 256>}, {pipeline_mode = #tpu.pipeline_mode<synchronous>, transform_indices = @transform_1, window_bounds = array<i64: 256, 32>}, {pipeline_mode = #tpu.pipeline_mode<synchronous>, transform_indices = @transform_2, window_bounds = array<i64: 1, 32>}, {pipeline_mode = #tpu.pipeline_mode<synchronous>, transform_indices = @transform_3, window_bounds = array<i64: 32, 32>}, {pipeline_mode = #tpu.pipeline_mode<synchronous>, transform_indices = @transform_4, window_bounds = array<i64: 1, 32>}, {pipeline_mode = #tpu.pipeline_mode<synchronous>, transform_indices = @transform_5, window_bounds = array<i64: 32, 8>}, {pipeline_mode = #tpu.pipeline_mode<synchronous>, transform_indices = @transform_6, window_bounds = array<i64: 1, 8>}, {pipeline_mode = #tpu.pipeline_mode<synchronous>, transform_indices = @transform_7, window_bounds = array<i64: 32, 8>}, {pipeline_mode = #tpu.pipeline_mode<synchronous>, transform_indices = @transform_8, window_bounds = array<i64: 1, 8>}, {transform_indices = @transform_9, window_bounds = array<i64: 2, 8, 8>}]} {
    %c0 = arith.constant 0 : index
    %c0_0 = arith.constant 0 : index
    %0 = vector.load %arg1[%c0, %c0_0] : memref<8x256xf32, #tpu.memory_space<vmem>>, vector<8x256xf32>
    %c0_1 = arith.constant 0 : index
    %c0_2 = arith.constant 0 : index
    %1 = vector.load %arg2[%c0_1, %c0_2] : memref<256x32xf32, #tpu.memory_space<vmem>>, vector<256x32xf32>
    %cst = arith.constant dense<0.000000e+00> : vector<8x32xf32>
    %2 = tpu.matmul %0, %1, %cst {dimension_numbers = #tpu.dot_dimension_numbers<[1], [0], [0], [1], [0, 0, 1, 1], [], []>} : vector<8x256xf32>, vector<256x32xf32>, vector<8x32xf32> -> vector<8x32xf32>
    %c0_3 = arith.constant 0 : index
    %c0_4 = arith.constant 0 : index
    %3 = vector.load %arg3[%c0_3, %c0_4] : memref<1x32xf32, #tpu.memory_space<vmem>>, vector<1x32xf32>
    %4 = vector.broadcast %3 : vector<1x32xf32> to vector<8x32xf32>
    %5 = arith.addf %2, %4 : vector<8x32xf32>
    %cst_5 = arith.constant 0.000000e+00 : f32
    %6 = vector.broadcast %cst_5 : f32 to vector<8x32xf32>
    %7 = arith.cmpf ogt, %5, %6 : vector<8x32xf32>
    %cst_6 = arith.constant 0.00999999977 : f32
    %8 = vector.broadcast %cst_6 : f32 to vector<8x32xf32>
    %9 = arith.mulf %8, %5 : vector<8x32xf32>
    %10 = arith.select %7, %5, %9 : vector<8x32xi1>, vector<8x32xf32>
    %c0_7 = arith.constant 0 : index
    %c0_8 = arith.constant 0 : index
    %11 = vector.load %arg4[%c0_7, %c0_8] : memref<32x32xf32, #tpu.memory_space<vmem>>, vector<32x32xf32>
    %cst_9 = arith.constant dense<0.000000e+00> : vector<8x32xf32>
    %12 = tpu.matmul %10, %11, %cst_9 {dimension_numbers = #tpu.dot_dimension_numbers<[1], [0], [0], [1], [0, 0, 1, 1], [], []>} : vector<8x32xf32>, vector<32x32xf32>, vector<8x32xf32> -> vector<8x32xf32>
    %c0_10 = arith.constant 0 : index
    %c0_11 = arith.constant 0 : index
    %13 = vector.load %arg5[%c0_10, %c0_11] : memref<1x32xf32, #tpu.memory_space<vmem>>, vector<1x32xf32>
    %14 = vector.broadcast %13 : vector<1x32xf32> to vector<8x32xf32>
    %15 = arith.addf %12, %14 : vector<8x32xf32>
    %cst_12 = arith.constant 0.000000e+00 : f32
    %16 = vector.broadcast %cst_12 : f32 to vector<8x32xf32>
    %17 = arith.cmpf ogt, %15, %16 : vector<8x32xf32>
    %cst_13 = arith.constant 0.00999999977 : f32
    %18 = vector.broadcast %cst_13 : f32 to vector<8x32xf32>
    %19 = arith.mulf %18, %15 : vector<8x32xf32>
    %20 = arith.select %17, %15, %19 : vector<8x32xi1>, vector<8x32xf32>
    %c0_14 = arith.constant 0 : index
    %c0_15 = arith.constant 0 : index
    %21 = vector.load %arg6[%c0_14, %c0_15] : memref<32x8xf32, #tpu.memory_space<vmem>>, vector<32x8xf32>
    %cst_16 = arith.constant dense<0.000000e+00> : vector<8x8xf32>
    %22 = tpu.matmul %20, %21, %cst_16 {dimension_numbers = #tpu.dot_dimension_numbers<[1], [0], [0], [1], [0, 0, 1, 1], [], []>} : vector<8x32xf32>, vector<32x8xf32>, vector<8x8xf32> -> vector<8x8xf32>
    %c0_17 = arith.constant 0 : index
    %c0_18 = arith.constant 0 : index
    %23 = vector.load %arg7[%c0_17, %c0_18] : memref<1x8xf32, #tpu.memory_space<vmem>>, vector<1x8xf32>
    %24 = vector.broadcast %23 : vector<1x8xf32> to vector<8x8xf32>
    %25 = arith.addf %22, %24 : vector<8x8xf32>
    %c0_19 = arith.constant 0 : index
    %c0_20 = arith.constant 0 : index
    %26 = vector.load %arg8[%c0_19, %c0_20] : memref<32x8xf32, #tpu.memory_space<vmem>>, vector<32x8xf32>
    %cst_21 = arith.constant dense<0.000000e+00> : vector<8x8xf32>
    %27 = tpu.matmul %20, %26, %cst_21 {dimension_numbers = #tpu.dot_dimension_numbers<[1], [0], [0], [1], [0, 0, 1, 1], [], []>} : vector<8x32xf32>, vector<32x8xf32>, vector<8x8xf32> -> vector<8x8xf32>
    %c0_22 = arith.constant 0 : index
    %c0_23 = arith.constant 0 : index
    %28 = vector.load %arg9[%c0_22, %c0_23] : memref<1x8xf32, #tpu.memory_space<vmem>>, vector<1x8xf32>
    %29 = vector.broadcast %28 : vector<1x8xf32> to vector<8x8xf32>
    %30 = arith.addf %27, %29 : vector<8x8xf32>
    %31 = math.exp %30 : vector<8x8xf32>
    %cst_24 = arith.constant 9.99999997E-7 : f32
    %32 = vector.broadcast %cst_24 : f32 to vector<8x8xf32>
    %33 = arith.addf %31, %32 : vector<8x8xf32>
    %34 = math.sqrt %33 : vector<8x8xf32>
    %c0_25 = arith.constant 0 : index
    %c0_26 = arith.constant 0 : index
    %c0_27 = arith.constant 0 : index
    %35 = vector.load %arg10[%c0_25, %c0_26, %c0_27] : memref<2x8x8xf32, #tpu.memory_space<vmem>>, vector<1x8x8xf32>
    %36 = vector.shape_cast %35 : vector<1x8x8xf32> to vector<8x8xf32>
    %37 = vector.shape_cast %25 : vector<8x8xf32> to vector<1x8x8xf32>
    tpu.vector_store %arg10[%c0_25, %c0_26, %c0_27], %37 {strides = array<i32>} : memref<2x8x8xf32, #tpu.memory_space<vmem>>, vector<1x8x8xf32>,
    %c1 = arith.constant 1 : index
    %c0_28 = arith.constant 0 : index
    %c0_29 = arith.constant 0 : index
    %38 = vector.load %arg10[%c1, %c0_28, %c0_29] : memref<2x8x8xf32, #tpu.memory_space<vmem>>, vector<1x8x8xf32>
    %39 = vector.shape_cast %38 : vector<1x8x8xf32> to vector<8x8xf32>
    %40 = vector.shape_cast %34 : vector<8x8xf32> to vector<1x8x8xf32>
    tpu.vector_store %arg10[%c1, %c0_28, %c0_29], %40 {strides = array<i32>} : memref<2x8x8xf32, #tpu.memory_space<vmem>>, vector<1x8x8xf32>,
    return
  }
  func.func @transform_0(%arg0: i32) -> (i32, i32) {
    %c0_i32 = arith.constant 0 : i32
    %c0_i32_0 = arith.constant 0 : i32
    return %arg0, %c0_i32 : i32, i32
  }
  func.func @transform_1(%arg0: i32) -> (i32, i32) {
    %c0_i32 = arith.constant 0 : i32
    %c0_i32_0 = arith.constant 0 : i32
    %c0_i32_1 = arith.constant 0 : i32
    return %c0_i32, %c0_i32_0 : i32, i32
  }
  func.func @transform_2(%arg0: i32) -> (i32, i32) {
    %c0_i32 = arith.constant 0 : i32
    %c0_i32_0 = arith.constant 0 : i32
    %c0_i32_1 = arith.constant 0 : i32
    return %c0_i32, %c0_i32_0 : i32, i32
  }
  func.func @transform_3(%arg0: i32) -> (i32, i32) {
    %c0_i32 = arith.constant 0 : i32
    %c0_i32_0 = arith.constant 0 : i32
    %c0_i32_1 = arith.constant 0 : i32
    return %c0_i32, %c0_i32_0 : i32, i32
  }
  func.func @transform_4(%arg0: i32) -> (i32, i32) {
    %c0_i32 = arith.constant 0 : i32
    %c0_i32_0 = arith.constant 0 : i32
    %c0_i32_1 = arith.constant 0 : i32
    return %c0_i32, %c0_i32_0 : i32, i32
  }
  func.func @transform_5(%arg0: i32) -> (i32, i32) {
    %c0_i32 = arith.constant 0 : i32
    %c0_i32_0 = arith.constant 0 : i32
    %c0_i32_1 = arith.constant 0 : i32
    return %c0_i32, %c0_i32_0 : i32, i32
  }
  func.func @transform_6(%arg0: i32) -> (i32, i32) {
    %c0_i32 = arith.constant 0 : i32
    %c0_i32_0 = arith.constant 0 : i32
    %c0_i32_1 = arith.constant 0 : i32
    return %c0_i32, %c0_i32_0 : i32, i32
  }
  func.func @transform_7(%arg0: i32) -> (i32, i32) {
    %c0_i32 = arith.constant 0 : i32
    %c0_i32_0 = arith.constant 0 : i32
    %c0_i32_1 = arith.constant 0 : i32
    return %c0_i32, %c0_i32_0 : i32, i32
  }
  func.func @transform_8(%arg0: i32) -> (i32, i32) {
    %c0_i32 = arith.constant 0 : i32
    %c0_i32_0 = arith.constant 0 : i32
    %c0_i32_1 = arith.constant 0 : i32
    return %c0_i32, %c0_i32_0 : i32, i32
  }
  func.func @transform_9(%arg0: i32) -> (i32, i32, i32) {
    %c0_i32 = arith.constant 0 : i32
    %c0_i32_0 = arith.constant 0 : i32
    %c0_i32_1 = arith.constant 0 : i32
    return %c0_i32, %arg0, %c0_i32_0 : i32, i32, i32
  }
}

</mosaic_0001>

<llo_original>
// kernel: tpu_custom_call.1
$region0: #{tpu_custom_call.1}
  #allocation0 [shape = 'u32[]', space=smem, size = 0x4, offset = 0x4, fixed_abs, tag = 'smem constant byte address 0x4 - core index']
  #allocation1 [shape = 'u32[144,128]{1,0:T(1,128)}', space=vmem, size = 0x12000, scoped, tag = 'internal scratch']
  %s0 = inlined_call_operand.vmem [shape: f32[16,256], index: 0, kind: input, shape index: {}]
  %s1 = inlined_call_operand.vmem [shape: f32[256,32], index: 1, kind: input, shape index: {}]
  %s2 = inlined_call_operand.vmem [shape: f32[1,32], index: 2, kind: input, shape index: {}]
  %s3 = inlined_call_operand.vmem [shape: f32[32,32], index: 3, kind: input, shape index: {}]
  %s4 = inlined_call_operand.vmem [shape: f32[1,32], index: 4, kind: input, shape index: {}]
  %s5 = inlined_call_operand.vmem [shape: f32[32,8], index: 5, kind: input, shape index: {}]
  %s6 = inlined_call_operand.vmem [shape: f32[1,8], index: 6, kind: input, shape index: {}]
  %s7 = inlined_call_operand.vmem [shape: f32[32,8], index: 7, kind: input, shape index: {}]
  %s8 = inlined_call_operand.vmem [shape: f32[1,8], index: 8, kind: input, shape index: {}]
  %s9 = inlined_call_operand.vmem [shape: f32[2,16,8], index: 9, kind: output, shape index: {}]
  %s10 = sld [smem:[#allocation0]]
  $region103: #{tpu_custom_call.1} parent=0
    _
  %s12 = ssub.s32 1, %s10
  %s13 = scalar_select 0, %s12, %s10
  $region1: #{tpu_custom_call.1} parent=0
    #allocation2 [shape = 'u8[16384]{0}', space=vmem, size = 0x4000, scoped, tag = 'output window, operand 0']
    loop: start=0, step=1, limit=4
    $region2: #{tpu_custom_call.1} parent=1 // loop_pre_header
      _
    $region3: #{tpu_custom_call.1} parent=1 // loop_header
      %s15 = sphi 0, %s19
      %p16 = scmp.ge.s32.totalorder %s15, 4
      %s25 = sphi 0, %s27
      %s28 = sphi 0, %s25
      %s29 = sphi 0, %s28
      %s45 = sphi 0, %s29
      %s49 = sphi 0, %s49
      %s51 = sphi 0, %s49
      %s52 = sphi 0, %s51
      %s66 = sphi 0, %s52
      %s70 = sphi 0, %s70
      %s72 = sphi 0, %s70
      %s73 = sphi 0, %s72
      %s87 = sphi 0, %s73
      %s91 = sphi 0, %s91
      %s93 = sphi 0, %s91
      %s94 = sphi 0, %s93
      %s108 = sphi 0, %s94
      %s112 = sphi 0, %s112
      %s114 = sphi 0, %s112
      %s115 = sphi 0, %s114
      %s129 = sphi 0, %s115
      %s133 = sphi 0, %s133
      %s135 = sphi 0, %s133
      %s136 = sphi 0, %s135
      %s150 = sphi 0, %s136
      %s154 = sphi 0, %s154
      %s156 = sphi 0, %s154
      %s157 = sphi 0, %s156
      %s171 = sphi 0, %s157
      %s175 = sphi 0, %s175
      %s177 = sphi 0, %s175
      %s178 = sphi 0, %s177
      %s192 = sphi 0, %s178
      %s196 = sphi 0, %s196
      %s198 = sphi 0, %s196
      %s199 = sphi 0, %s198
      %s213 = sphi 0, %s199
      %s219 = sphi 0, %s221
      %s222 = sphi 0, %s219
      %s223 = sphi 0, %s222
      %s239 = sphi 0, %s223
    $region4: #{tpu_custom_call.1} parent=1 // loop_header_branch
      %18 = sbr.rel (%p16) target = $region8
    $region5: #{tpu_custom_call.1} parent=1 // loop_body
      %s20 = ssub.s32 %s15, 1
      %s21 = ssub.s32 %s15, 2
      %s22 = sadd.s32 %s15, 1
      %s23 = ssub.s32 %s15, %s22
      %p24 = scmp.eq.s32.totalorder %s23, 0
      %s26 = sadd.s32 %s25, 1
      %s27 = scalar_select %p24, %s25, %s26
      %p30 = pneg %p24
      %p31 = scmp.eq.s32.totalorder %s15, 1
      %p32 = por %p30, %p31
      %p33 = scmp.ne.s32.totalorder %s25, %s28
      %p34 = scmp.eq.s32.totalorder %s15, 0
      %p35 = por %p33, %p34
      %p36 = scmp.ne.s32.totalorder %s25, %s28
      %p37 = scmp.eq.s32.totalorder %s20, 1
      %p38 = por %p36, %p37
      %p39 = scmp.ne.s32.totalorder %s28, %s29
      %p40 = scmp.eq.s32.totalorder %s20, 0
      %p41 = por %p39, %p40
      %p42 = scmp.ne.s32.totalorder %s28, %s29
      %p43 = scmp.eq.s32.totalorder %s21, 1
      %p44 = por %p42, %p43
      %p46 = scmp.ne.s32.totalorder %s29, %s45
      %p47 = scmp.eq.s32.totalorder %s21, 0
      %p48 = por %p46, %p47
      %s50 = sadd.s32 %s49, 1
      %p53 = scmp.eq.s32.totalorder %s15, 1
      %p54 = scmp.ne.s32.totalorder %s49, %s51
      %p55 = scmp.eq.s32.totalorder %s15, 0
      %p56 = por %p54, %p55
      %p57 = scmp.ne.s32.totalorder %s49, %s51
      %p58 = scmp.eq.s32.totalorder %s20, 1
      %p59 = por %p57, %p58
      %p60 = scmp.ne.s32.totalorder %s51, %s52
      %p61 = scmp.eq.s32.totalorder %s20, 0
      %p62 = por %p60, %p61
      %p63 = scmp.ne.s32.totalorder %s51, %s52
      %p64 = scmp.eq.s32.totalorder %s21, 1
      %p65 = por %p63, %p64
      %p67 = scmp.ne.s32.totalorder %s52, %s66
      %p68 = scmp.eq.s32.totalorder %s21, 0
      %p69 = por %p67, %p68
      %s71 = sadd.s32 %s70, 1
      %p74 = scmp.eq.s32.totalorder %s15, 1
      %p75 = scmp.ne.s32.totalorder %s70, %s72
      %p76 = scmp.eq.s32.totalorder %s15, 0
      %p77 = por %p75, %p76
      %p78 = scmp.ne.s32.totalorder %s70, %s72
      %p79 = scmp.eq.s32.totalorder %s20, 1
      %p80 = por %p78, %p79
      %p81 = scmp.ne.s32.totalorder %s72, %s73
      %p82 = scmp.eq.s32.totalorder %s20, 0
      %p83 = por %p81, %p82
      %p84 = scmp.ne.s32.totalorder %s72, %s73
      %p85 = scmp.eq.s32.totalorder %s21, 1
      %p86 = por %p84, %p85
      %p88 = scmp.ne.s32.totalorder %s73, %s87
      %p89 = scmp.eq.s32.totalorder %s21, 0
      %p90 = por %p88, %p89
      %s92 = sadd.s32 %s91, 1
      %p95 = scmp.eq.s32.totalorder %s15, 1
      %p96 = scmp.ne.s32.totalorder %s91, %s93
      %p97 = scmp.eq.s32.totalorder %s15, 0
      %p98 = por %p96, %p97
      %p99 = scmp.ne.s32.totalorder %s91, %s93
      %p100 = scmp.eq.s32.totalorder %s20, 1
      %p101 = por %p99, %p100
      %p102 = scmp.ne.s32.totalorder %s93, %s94
      %p103 = scmp.eq.s32.totalorder %s20, 0
      %p104 = por %p102, %p103
      %p105 = scmp.ne.s32.totalorder %s93, %s94
      %p106 = scmp.eq.s32.totalorder %s21, 1
      %p107 = por %p105, %p106
      %p109 = scmp.ne.s32.totalorder %s94, %s108
      %p110 = scmp.eq.s32.totalorder %s21, 0
      %p111 = por %p109, %p110
      %s113 = sadd.s32 %s112, 1
      %p116 = scmp.eq.s32.totalorder %s15, 1
      %p117 = scmp.ne.s32.totalorder %s112, %s114
      %p118 = scmp.eq.s32.totalorder %s15, 0
      %p119 = por %p117, %p118
      %p120 = scmp.ne.s32.totalorder %s112, %s114
      %p121 = scmp.eq.s32.totalorder %s20, 1
      %p122 = por %p120, %p121
      %p123 = scmp.ne.s32.totalorder %s114, %s115
      %p124 = scmp.eq.s32.totalorder %s20, 0
      %p125 = por %p123, %p124
      %p126 = scmp.ne.s32.totalorder %s114, %s115
      %p127 = scmp.eq.s32.totalorder %s21, 1
      %p128 = por %p126, %p127
      %p130 = scmp.ne.s32.totalorder %s115, %s129
      %p131 = scmp.eq.s32.totalorder %s21, 0
      %p132 = por %p130, %p131
      %s134 = sadd.s32 %s133, 1
      %p137 = scmp.eq.s32.totalorder %s15, 1
      %p138 = scmp.ne.s32.totalorder %s133, %s135
      %p139 = scmp.eq.s32.totalorder %s15, 0
      %p140 = por %p138, %p139
      %p141 = scmp.ne.s32.totalorder %s133, %s135
      %p142 = scmp.eq.s32.totalorder %s20, 1
      %p143 = por %p141, %p142
      %p144 = scmp.ne.s32.totalorder %s135, %s136
      %p145 = scmp.eq.s32.totalorder %s20, 0
      %p146 = por %p144, %p145
      %p147 = scmp.ne.s32.totalorder %s135, %s136
      %p148 = scmp.eq.s32.totalorder %s21, 1
      %p149 = por %p147, %p148
      %p151 = scmp.ne.s32.totalorder %s136, %s150
      %p152 = scmp.eq.s32.totalorder %s21, 0
      %p153 = por %p151, %p152
      %s155 = sadd.s32 %s154, 1
      %p158 = scmp.eq.s32.totalorder %s15, 1
      %p159 = scmp.ne.s32.totalorder %s154, %s156
      %p160 = scmp.eq.s32.totalorder %s15, 0
      %p161 = por %p159, %p160
      %p162 = scmp.ne.s32.totalorder %s154, %s156
      %p163 = scmp.eq.s32.totalorder %s20, 1
      %p164 = por %p162, %p163
      %p165 = scmp.ne.s32.totalorder %s156, %s157
      %p166 = scmp.eq.s32.totalorder %s20, 0
      %p167 = por %p165, %p166
      %p168 = scmp.ne.s32.totalorder %s156, %s157
      %p169 = scmp.eq.s32.totalorder %s21, 1
      %p170 = por %p168, %p169
      %p172 = scmp.ne.s32.totalorder %s157, %s171
      %p173 = scmp.eq.s32.totalorder %s21, 0
      %p174 = por %p172, %p173
      %s176 = sadd.s32 %s175, 1
      %p179 = scmp.eq.s32.totalorder %s15, 1
      %p180 = scmp.ne.s32.totalorder %s175, %s177
      %p181 = scmp.eq.s32.totalorder %s15, 0
      %p182 = por %p180, %p181
      %p183 = scmp.ne.s32.totalorder %s175, %s177
      %p184 = scmp.eq.s32.totalorder %s20, 1
      %p185 = por %p183, %p184
      %p186 = scmp.ne.s32.totalorder %s177, %s178
      %p187 = scmp.eq.s32.totalorder %s20, 0
      %p188 = por %p186, %p187
      %p189 = scmp.ne.s32.totalorder %s177, %s178
      %p190 = scmp.eq.s32.totalorder %s21, 1
      %p191 = por %p189, %p190
      %p193 = scmp.ne.s32.totalorder %s178, %s192
      %p194 = scmp.eq.s32.totalorder %s21, 0
      %p195 = por %p193, %p194
      %s197 = sadd.s32 %s196, 1
      %p200 = scmp.eq.s32.totalorder %s15, 1
      %p201 = scmp.ne.s32.totalorder %s196, %s198
      %p202 = scmp.eq.s32.totalorder %s15, 0
      %p203 = por %p201, %p202
      %p204 = scmp.ne.s32.totalorder %s196, %s198
      %p205 = scmp.eq.s32.totalorder %s20, 1
      %p206 = por %p204, %p205
      %p207 = scmp.ne.s32.totalorder %s198, %s199
      %p208 = scmp.eq.s32.totalorder %s20, 0
      %p209 = por %p207, %p208
      %p210 = scmp.ne.s32.totalorder %s198, %s199
      %p211 = scmp.eq.s32.totalorder %s21, 1
      %p212 = por %p210, %p211
      %p214 = scmp.ne.s32.totalorder %s199, %s213
      %p215 = scmp.eq.s32.totalorder %s21, 0
      %p216 = por %p214, %p215
      %s217 = ssub.s32 %s15, %s22
      %p218 = scmp.eq.s32.totalorder %s217, 0
      %s220 = sadd.s32 %s219, 1
      %s221 = scalar_select %p218, %s219, %s220
      %p224 = pneg %p218
      %p225 = scmp.eq.s32.totalorder %s15, 1
      %p226 = por %p224, %p225
      %p227 = scmp.ne.s32.totalorder %s219, %s222
      %p228 = scmp.eq.s32.totalorder %s15, 0
      %p229 = por %p227, %p228
      %p230 = scmp.ne.s32.totalorder %s219, %s222
      %p231 = scmp.eq.s32.totalorder %s20, 1
      %p232 = por %p230, %p231
      %p233 = scmp.ne.s32.totalorder %s222, %s223
      %p234 = scmp.eq.s32.totalorder %s20, 0
      %p235 = por %p233, %p234
      %p236 = scmp.ne.s32.totalorder %s222, %s223
      %p237 = scmp.eq.s32.totalorder %s21, 1
      %p238 = por %p236, %p237
      %p240 = scmp.ne.s32.totalorder %s223, %s239
      %p241 = scmp.eq.s32.totalorder %s21, 0
      %p242 = por %p240, %p241
      %p243 = scmp.le.s32.totalorder 1, %s15
      %p244 = scmp.lt.s32.totalorder %s15, 3
      %p245 = pnand %p243, %p244
      %p246 = pneg %p245
      // Predicated region
      $region9: #{tpu_custom_call.1} parent=5 // pred_check
        _
      $region10: #{tpu_custom_call.1} parent=5 // pred_check_branch
        %248 = sbr.rel (%p245) target = $region12
      $region11: #{tpu_custom_call.1} parent=5 // pred_region
        %s249 = ssub.s32 %s15, 1
        // Predicated region
        $region13: #{tpu_custom_call.1} parent=11 // pred_check
          %p250 = pneg %p62
        $region14: #{tpu_custom_call.1} parent=11 // pred_check_branch
          %252 = sbr.rel (%p250) target = $region16
        $region15: #{tpu_custom_call.1} parent=11 // pred_region
          _
        $region16: #{tpu_custom_call.1} parent=11 // pred_fallthru
          _
        // Predicated region
        $region17: #{tpu_custom_call.1} parent=11 // pred_check
          %p253 = pneg %p83
        $region18: #{tpu_custom_call.1} parent=11 // pred_check_branch
          %255 = sbr.rel (%p253) target = $region20
        $region19: #{tpu_custom_call.1} parent=11 // pred_region
          _
        $region20: #{tpu_custom_call.1} parent=11 // pred_fallthru
          _
        // Predicated region
        $region21: #{tpu_custom_call.1} parent=11 // pred_check
          %p256 = pneg %p104
        $region22: #{tpu_custom_call.1} parent=11 // pred_check_branch
          %258 = sbr.rel (%p256) target = $region24
        $region23: #{tpu_custom_call.1} parent=11 // pred_region
          _
        $region24: #{tpu_custom_call.1} parent=11 // pred_fallthru
          _
        // Predicated region
        $region25: #{tpu_custom_call.1} parent=11 // pred_check
          %p259 = pneg %p125
        $region26: #{tpu_custom_call.1} parent=11 // pred_check_branch
          %261 = sbr.rel (%p259) target = $region28
        $region27: #{tpu_custom_call.1} parent=11 // pred_region
          _
        $region28: #{tpu_custom_call.1} parent=11 // pred_fallthru
          _
        // Predicated region
        $region29: #{tpu_custom_call.1} parent=11 // pred_check
          %p262 = pneg %p146
        $region30: #{tpu_custom_call.1} parent=11 // pred_check_branch
          %264 = sbr.rel (%p262) target = $region32
        $region31: #{tpu_custom_call.1} parent=11 // pred_region
          _
        $region32: #{tpu_custom_call.1} parent=11 // pred_fallthru
          _
        // Predicated region
        $region33: #{tpu_custom_call.1} parent=11 // pred_check
          %p265 = pneg %p167
        $region34: #{tpu_custom_call.1} parent=11 // pred_check_branch
          %267 = sbr.rel (%p265) target = $region36
        $region35: #{tpu_custom_call.1} parent=11 // pred_region
          _
        $region36: #{tpu_custom_call.1} parent=11 // pred_fallthru
          _
        // Predicated region
        $region37: #{tpu_custom_call.1} parent=11 // pred_check
          %p268 = pneg %p188
        $region38: #{tpu_custom_call.1} parent=11 // pred_check_branch
          %270 = sbr.rel (%p268) target = $region40
        $region39: #{tpu_custom_call.1} parent=11 // pred_region
          _
        $region40: #{tpu_custom_call.1} parent=11 // pred_fallthru
          _
        // Predicated region
        $region41: #{tpu_custom_call.1} parent=11 // pred_check
          %p271 = pneg %p209
        $region42: #{tpu_custom_call.1} parent=11 // pred_check_branch
          %273 = sbr.rel (%p271) target = $region44
        $region43: #{tpu_custom_call.1} parent=11 // pred_region
          _
        $region44: #{tpu_custom_call.1} parent=11 // pred_fallthru
          _
      $region12: #{tpu_custom_call.1} parent=5 // pred_fallthru
        _
      %p274 = scmp.lt.s32.totalorder %s15, 2
      // Predicated region
      $region45: #{tpu_custom_call.1} parent=5 // pred_check
        %p275 = pneg %p274
      $region46: #{tpu_custom_call.1} parent=5 // pred_check_branch
        %277 = sbr.rel (%p275) target = $region48
      $region47: #{tpu_custom_call.1} parent=5 // pred_region
        // Predicated region
        $region49: #{tpu_custom_call.1} parent=47 // pred_check
          %p278 = pneg %p35
        $region50: #{tpu_custom_call.1} parent=47 // pred_check_branch
          %280 = sbr.rel (%p278) target = $region52
        $region51: #{tpu_custom_call.1} parent=47 // pred_region
          %p281 = scmp.lt.s32.totalorder %s15, 1
          %s282 = scalar_select %p281, %s15, 1
          %s283 = smul.addr %s282, 2
          %s284 = smul.addr %s283, 8
          %s285 = scalar_lea.vmem %s0, %s284
        $region52: #{tpu_custom_call.1} parent=47 // pred_fallthru
          _
      $region48: #{tpu_custom_call.1} parent=5 // pred_fallthru
        _
      %p286 = scmp.le.s32.totalorder 1, %s15
      %p287 = scmp.lt.s32.totalorder %s15, 3
      %p288 = pnand %p286, %p287
      %p289 = pneg %p288
      // Predicated region
      $region53: #{tpu_custom_call.1} parent=5 // pred_check
        _
      $region54: #{tpu_custom_call.1} parent=5 // pred_check_branch
        %291 = sbr.rel (%p288) target = $region56
      $region55: #{tpu_custom_call.1} parent=5 // pred_region
        %s292 = ssub.s32 %s15, 1
        %p293 = scmp.lt.s32.totalorder %s20, 1
        %s294 = scalar_select %p293, %s20, 1
        %s295 = smul.addr %s294, 2
        %s296 = smul.addr %s295, 8
        %s297 = scalar_lea.vmem %s0, %s296
        %p298 = pneg %p41
        %p299 = pneg %p38
        %p300 = pneg %p62
        %p301 = pneg %p59
        %p302 = pneg %p83
        %p303 = pneg %p80
        %p304 = pneg %p104
        %p305 = pneg %p101
        %p306 = pneg %p125
        %p307 = pneg %p122
        %p308 = pneg %p146
        %p309 = pneg %p143
        %p310 = pneg %p167
        %p311 = pneg %p164
        %p312 = pneg %p188
        %p313 = pneg %p185
        %p314 = pneg %p209
        %p315 = pneg %p206
        %p316 = pneg %p235
        %p317 = pneg %p232
        %s318 = sand.u32 %s222, 1
        %s319 = sand.u32 %s222, 1
        %s320 = smul.addr %s319, 16
        %s321 = scalar_lea.vmem [#allocation2], %s320
        %p322 = scmp.lt.s32.totalorder %s20, 1
        %s323 = scalar_select %p322, %s20, 1
        %s324 = smul.addr %s323, 2
        %s325 = smul.addr %s324, 8
        %s326 = scalar_lea.vmem %s0, %s325
        %v327 = vld [vmem:[%s326] sm:$0xff]
        %v328 = vld [vmem:[%s326 + $0x8] sm:$0xff]
        %v329 = vld [vmem:[%s1] sm:$0xff]
        %v330 = vld [vmem:[%s1 + $0x8] sm:$0xff]
        %v331 = vld [vmem:[%s1 + $0x10] sm:$0xff]
        %v332 = vld [vmem:[%s1 + $0x18] sm:$0xff]
        %v333 = vld [vmem:[%s1 + $0x20] sm:$0xff]
        %v334 = vld [vmem:[%s1 + $0x28] sm:$0xff]
        %v335 = vld [vmem:[%s1 + $0x30] sm:$0xff]
        %v336 = vld [vmem:[%s1 + $0x38] sm:$0xff]
        %v337 = vld [vmem:[%s1 + $0x40] sm:$0xff]
        %v338 = vld [vmem:[%s1 + $0x48] sm:$0xff]
        %v339 = vld [vmem:[%s1 + $0x50] sm:$0xff]
        %v340 = vld [vmem:[%s1 + $0x58] sm:$0xff]
        %v341 = vld [vmem:[%s1 + $0x60] sm:$0xff]
        %v342 = vld [vmem:[%s1 + $0x68] sm:$0xff]
        %v343 = vld [vmem:[%s1 + $0x70] sm:$0xff]
        %v344 = vld [vmem:[%s1 + $0x78] sm:$0xff]
        %v345 = vld [vmem:[%s1 + $0x80] sm:$0xff]
        %v346 = vld [vmem:[%s1 + $0x88] sm:$0xff]
        %v347 = vld [vmem:[%s1 + $0x90] sm:$0xff]
        %v348 = vld [vmem:[%s1 + $0x98] sm:$0xff]
        %v349 = vld [vmem:[%s1 + $0xa0] sm:$0xff]
        %v350 = vld [vmem:[%s1 + $0xa8] sm:$0xff]
        %v351 = vld [vmem:[%s1 + $0xb0] sm:$0xff]
        %v352 = vld [vmem:[%s1 + $0xb8] sm:$0xff]
        %v353 = vld [vmem:[%s1 + $0xc0] sm:$0xff]
        %v354 = vld [vmem:[%s1 + $0xc8] sm:$0xff]
        %v355 = vld [vmem:[%s1 + $0xd0] sm:$0xff]
        %v356 = vld [vmem:[%s1 + $0xd8] sm:$0xff]
        %v357 = vld [vmem:[%s1 + $0xe0] sm:$0xff]
        %v358 = vld [vmem:[%s1 + $0xe8] sm:$0xff]
        %v359 = vld [vmem:[%s1 + $0xf0] sm:$0xff]
        %v360 = vld [vmem:[%s1 + $0xf8] sm:$0xff]
        %v361 = vld [vmem:[%s2] sm:$0x1]
        %v363 = vlaneseq
        %v364 = vshrl.u32 %v363, 7
        %v365 = vsub.s32 0, %v364
        %v366 = vrot.slane %v361, %v365
        %368 = vmatprep.subr.mxu0 0.0
        %369 = vmatpush1.msra.mxu0 %v329
        %370 = vmatprep.subr.mxu0 0.0
        %371 = vmatpush1.msra.mxu0 %v330
        %372 = vmatprep.subr.mxu0 0.0
        %373 = vmatpush1.msra.mxu0 %v331
        %374 = vmatprep.subr.mxu0 0.0
        %375 = vmatpush1.msra.mxu0 %v332
        %376 = vmatprep.subr.mxu0 0.0
        %377 = vmatpush1.msra.mxu0 %v333
        %378 = vmatprep.subr.mxu0 0.0
        %379 = vmatpush1.msra.mxu0 %v334
        %380 = vmatprep.subr.mxu0 0.0
        %381 = vmatpush1.msra.mxu0 %v335
        %382 = vmatprep.subr.mxu0 0.0
        %383 = vmatpush1.msra.mxu0 %v336
        %384 = vmatprep.subr.mxu0 0.0
        %385 = vmatpush1.msra.mxu0 %v337
        %386 = vmatprep.subr.mxu0 0.0
        %387 = vmatpush1.msra.mxu0 %v338
        %388 = vmatprep.subr.mxu0 0.0
        %389 = vmatpush1.msra.mxu0 %v339
        %390 = vmatprep.subr.mxu0 0.0
        %391 = vmatpush1.msra.mxu0 %v340
        %392 = vmatprep.subr.mxu0 0.0
        %393 = vmatpush1.msra.mxu0 %v341
        %394 = vmatprep.subr.mxu0 0.0
        %395 = vmatpush1.msra.mxu0 %v342
        %396 = vmatprep.subr.mxu0 0.0
        %397 = vmatpush1.msra.mxu0 %v343
        %398 = vmatprep.subr.mxu0 0.0
        %399 = vmatpush1.msra.mxu0 %v344
        %400 = vmatprep.subr.mxu0 0.0
        %401 = vmatpush1.msra.mxu0 %v345
        %402 = vmatprep.subr.mxu0 0.0
        %403 = vmatpush1.msra.mxu0 %v346
        %404 = vmatprep.subr.mxu0 0.0
        %405 = vmatpush1.msra.mxu0 %v347
        %406 = vmatprep.subr.mxu0 0.0
        %407 = vmatpush1.msra.mxu0 %v348
        %408 = vmatprep.subr.mxu0 0.0
        %409 = vmatpush1.msra.mxu0 %v349
        %410 = vmatprep.subr.mxu0 0.0
        %411 = vmatpush1.msra.mxu0 %v350
        %412 = vmatprep.subr.mxu0 0.0
        %413 = vmatpush1.msra.mxu0 %v351
        %414 = vmatprep.subr.mxu0 0.0
        %415 = vmatpush1.msra.mxu0 %v352
        %416 = vmatprep.subr.mxu0 0.0
        %417 = vmatpush1.msra.mxu0 %v353
        %418 = vmatprep.subr.mxu0 0.0
        %419 = vmatpush1.msra.mxu0 %v354
        %420 = vmatprep.subr.mxu0 0.0
        %421 = vmatpush1.msra.mxu0 %v355
        %422 = vmatprep.subr.mxu0 0.0
        %423 = vmatpush1.msra.mxu0 %v356
        %424 = vmatprep.subr.mxu0 0.0
        %425 = vmatpush1.msra.mxu0 %v357
        %426 = vmatprep.subr.mxu0 0.0
        %427 = vmatpush1.msra.mxu0 %v358
        %428 = vmatprep.subr.mxu0 0.0
        %429 = vmatpush1.msra.mxu0 %v359
        %430 = vmatprep.subr.mxu0 0.0
        %431 = vmatpush1.msra.mxu0 %v360
        %432 = vmatprep.mubr.f32.mxu0 %v328
        %433 = vmatmul.mubr.f32.gmra.mrb[0].mxu0 %v327
        %v434 = vpop.f32.mrb[0].mxu0
        %v435 = vadd.f32 %v366, %v434
        %v436 = vpop.f32.mrb[0].mxu0
        %437 = vdwg.mxu0
        %vm438 = vcmp.gt.f32.partialorder %v435, 0.0
        %v439 = vmul.f32 %v435, 0.01
        %v440 = vsel %vm438, %v435, %v439
        %v441 = vld [vmem:[%s3] sm:$0xff]
        %v442 = vld [vmem:[%s3 + $0x8] sm:$0xff]
        %v443 = vld [vmem:[%s3 + $0x10] sm:$0xff]
        %v444 = vld [vmem:[%s3 + $0x18] sm:$0xff]
        %v445 = vld [vmem:[%s4] sm:$0x1]
        %v447 = vlaneseq
        %v448 = vshrl.u32 %v447, 7
        %v449 = vsub.s32 0, %v448
        %v450 = vrot.slane %v445, %v449
        %vm452 = vcmask 261120
        %v454 = vsel %vm452, %v440, 0
        %456 = vmatprep.subr.mxu0 0.0
        %457 = vmatpush1.msra.mxu0 %v441
        %458 = vmatprep.subr.mxu0 0.0
        %459 = vmatpush1.msra.mxu0 %v442
        %460 = vmatprep.subr.mxu0 0.0
        %461 = vmatpush1.msra.mxu0 %v443
        %462 = vmatprep.subr.mxu0 0.0
        %463 = vmatpush1.msra.mxu0 %v444
        %464 = vmatprep.subr.mxu0 0.0
        %465 = vmatpush1.msra.mxu0 0.0
        %466 = vmatprep.subr.mxu0 0.0
        %467 = vmatpush1.msra.mxu0 0.0
        %468 = vmatprep.subr.mxu0 0.0
        %469 = vmatpush1.msra.mxu0 0.0
        %470 = vmatprep.subr.mxu0 0.0
        %471 = vmatpush1.msra.mxu0 0.0
        %472 = vmatprep.subr.mxu0 0.0
        %473 = vmatpush1.msra.mxu0 0.0
        %474 = vmatprep.subr.mxu0 0.0
        %475 = vmatpush1.msra.mxu0 0.0
        %476 = vmatprep.subr.mxu0 0.0
        %477 = vmatpush1.msra.mxu0 0.0
        %478 = vmatprep.subr.mxu0 0.0
        %479 = vmatpush1.msra.mxu0 0.0
        %480 = vmatprep.subr.mxu0 0.0
        %481 = vmatpush1.msra.mxu0 0.0
        %482 = vmatprep.subr.mxu0 0.0
        %483 = vmatpush1.msra.mxu0 0.0
        %484 = vmatprep.subr.mxu0 0.0
        %485 = vmatpush1.msra.mxu0 0.0
        %486 = vmatprep.subr.mxu0 0.0
        %487 = vmatpush1.msra.mxu0 0.0
        %488 = vmatprep.subr.mxu0 0.0
        %489 = vmatpush1.msra.mxu0 0.0
        %490 = vmatprep.subr.mxu0 0.0
        %491 = vmatpush1.msra.mxu0 0.0
        %492 = vmatprep.subr.mxu0 0.0
        %493 = vmatpush1.msra.mxu0 0.0
        %494 = vmatprep.subr.mxu0 0.0
        %495 = vmatpush1.msra.mxu0 0.0
        %496 = vmatprep.subr.mxu0 0.0
        %497 = vmatpush1.msra.mxu0 0.0
        %498 = vmatprep.subr.mxu0 0.0
        %499 = vmatpush1.msra.mxu0 0.0
        %500 = vmatprep.subr.mxu0 0.0
        %501 = vmatpush1.msra.mxu0 0.0
        %502 = vmatprep.subr.mxu0 0.0
        %503 = vmatpush1.msra.mxu0 0.0
        %504 = vmatprep.subr.mxu0 0.0
        %505 = vmatpush1.msra.mxu0 0.0
        %506 = vmatprep.subr.mxu0 0.0
        %507 = vmatpush1.msra.mxu0 0.0
        %508 = vmatprep.subr.mxu0 0.0
        %509 = vmatpush1.msra.mxu0 0.0
        %510 = vmatprep.subr.mxu0 0.0
        %511 = vmatpush1.msra.mxu0 0.0
        %512 = vmatprep.subr.mxu0 0.0
        %513 = vmatpush1.msra.mxu0 0.0
        %514 = vmatprep.subr.mxu0 0.0
        %515 = vmatpush1.msra.mxu0 0.0
        %516 = vmatprep.subr.mxu0 0.0
        %517 = vmatpush1.msra.mxu0 0.0
        %518 = vmatprep.subr.mxu0 0.0
        %519 = vmatpush1.msra.mxu0 0.0
        %520 = vmatprep.mubr.f32.mxu0 0.0
        %521 = vmatmul.mubr.f32.gmra.mrb[0].mxu0 %v454
        %v522 = vpop.f32.mrb[0].mxu0
        %v523 = vadd.f32 %v450, %v522
        %v524 = vpop.f32.mrb[0].mxu0
        %525 = vdwg.mxu0
        %vm526 = vcmp.gt.f32.partialorder %v523, 0.0
        %v527 = vmul.f32 %v523, 0.01
        %v528 = vsel %vm526, %v523, %v527
        %v529 = vld [vmem:[%s5] sm:$0xff]
        %v530 = vld [vmem:[%s5 + $0x8] sm:$0xff]
        %v531 = vld [vmem:[%s5 + $0x10] sm:$0xff]
        %v532 = vld [vmem:[%s5 + $0x18] sm:$0xff]
        %v533 = vld [vmem:[%s6] sm:$0x1]
        %v535 = vlaneseq
        %v536 = vshrl.u32 %v535, 7
        %v537 = vsub.s32 0, %v536
        %v538 = vrot.slane %v533, %v537
        %v541 = vsel %vm452, %v528, 0
        %543 = vmatprep.subr.mxu0 0.0
        %544 = vmatpush1.msra.mxu0 %v529
        %545 = vmatprep.subr.mxu0 0.0
        %546 = vmatpush1.msra.mxu0 %v530
        %547 = vmatprep.subr.mxu0 0.0
        %548 = vmatpush1.msra.mxu0 %v531
        %549 = vmatprep.subr.mxu0 0.0
        %550 = vmatpush1.msra.mxu0 %v532
        %551 = vmatprep.subr.mxu0 0.0
        %552 = vmatpush1.msra.mxu0 0.0
        %553 = vmatprep.subr.mxu0 0.0
        %554 = vmatpush1.msra.mxu0 0.0
        %555 = vmatprep.subr.mxu0 0.0
        %556 = vmatpush1.msra.mxu0 0.0
        %557 = vmatprep.subr.mxu0 0.0
        %558 = vmatpush1.msra.mxu0 0.0
        %559 = vmatprep.subr.mxu0 0.0
        %560 = vmatpush1.msra.mxu0 0.0
        %561 = vmatprep.subr.mxu0 0.0
        %562 = vmatpush1.msra.mxu0 0.0
        %563 = vmatprep.subr.mxu0 0.0
        %564 = vmatpush1.msra.mxu0 0.0
        %565 = vmatprep.subr.mxu0 0.0
        %566 = vmatpush1.msra.mxu0 0.0
        %567 = vmatprep.subr.mxu0 0.0
        %568 = vmatpush1.msra.mxu0 0.0
        %569 = vmatprep.subr.mxu0 0.0
        %570 = vmatpush1.msra.mxu0 0.0
        %571 = vmatprep.subr.mxu0 0.0
        %572 = vmatpush1.msra.mxu0 0.0
        %573 = vmatprep.subr.mxu0 0.0
        %574 = vmatpush1.msra.mxu0 0.0
        %575 = vmatprep.subr.mxu0 0.0
        %576 = vmatpush1.msra.mxu0 0.0
        %577 = vmatprep.subr.mxu0 0.0
        %578 = vmatpush1.msra.mxu0 0.0
        %579 = vmatprep.subr.mxu0 0.0
        %580 = vmatpush1.msra.mxu0 0.0
        %581 = vmatprep.subr.mxu0 0.0
        %582 = vmatpush1.msra.mxu0 0.0
        %583 = vmatprep.subr.mxu0 0.0
        %584 = vmatpush1.msra.mxu0 0.0
        %585 = vmatprep.subr.mxu0 0.0
        %586 = vmatpush1.msra.mxu0 0.0
        %587 = vmatprep.subr.mxu0 0.0
        %588 = vmatpush1.msra.mxu0 0.0
        %589 = vmatprep.subr.mxu0 0.0
        %590 = vmatpush1.msra.mxu0 0.0
        %591 = vmatprep.subr.mxu0 0.0
        %592 = vmatpush1.msra.mxu0 0.0
        %593 = vmatprep.subr.mxu0 0.0
        %594 = vmatpush1.msra.mxu0 0.0
        %595 = vmatprep.subr.mxu0 0.0
        %596 = vmatpush1.msra.mxu0 0.0
        %597 = vmatprep.subr.mxu0 0.0
        %598 = vmatpush1.msra.mxu0 0.0
        %599 = vmatprep.subr.mxu0 0.0
        %600 = vmatpush1.msra.mxu0 0.0
        %601 = vmatprep.subr.mxu0 0.0
        %602 = vmatpush1.msra.mxu0 0.0
        %603 = vmatprep.subr.mxu0 0.0
        %604 = vmatpush1.msra.mxu0 0.0
        %605 = vmatprep.subr.mxu0 0.0
        %606 = vmatpush1.msra.mxu0 0.0
        %607 = vmatprep.mubr.f32.mxu0 0.0
        %608 = vmatmul.mubr.f32.gmra.mrb[0].mxu0 %v541
        %v609 = vpop.f32.mrb[0].mxu0
        %v610 = vadd.f32 %v538, %v609
        %v611 = vpop.f32.mrb[0].mxu0
        %612 = vdwg.mxu0
        %v613 = vld [vmem:[%s7] sm:$0xff]
        %v614 = vld [vmem:[%s7 + $0x8] sm:$0xff]
        %v615 = vld [vmem:[%s7 + $0x10] sm:$0xff]
        %v616 = vld [vmem:[%s7 + $0x18] sm:$0xff]
        %v617 = vld [vmem:[%s8] sm:$0x1]
        %v619 = vlaneseq
        %v620 = vshrl.u32 %v619, 7
        %v621 = vsub.s32 0, %v620
        %v622 = vrot.slane %v617, %v621
        %624 = vmatprep.subr.mxu0 0.0
        %625 = vmatpush1.msra.mxu0 %v613
        %626 = vmatprep.subr.mxu0 0.0
        %627 = vmatpush1.msra.mxu0 %v614
        %628 = vmatprep.subr.mxu0 0.0
        %629 = vmatpush1.msra.mxu0 %v615
        %630 = vmatprep.subr.mxu0 0.0
        %631 = vmatpush1.msra.mxu0 %v616
        %632 = vmatprep.subr.mxu0 0.0
        %633 = vmatpush1.msra.mxu0 0.0
        %634 = vmatprep.subr.mxu0 0.0
        %635 = vmatpush1.msra.mxu0 0.0
        %636 = vmatprep.subr.mxu0 0.0
        %637 = vmatpush1.msra.mxu0 0.0
        %638 = vmatprep.subr.mxu0 0.0
        %639 = vmatpush1.msra.mxu0 0.0
        %640 = vmatprep.subr.mxu0 0.0
        %641 = vmatpush1.msra.mxu0 0.0
        %642 = vmatprep.subr.mxu0 0.0
        %643 = vmatpush1.msra.mxu0 0.0
        %644 = vmatprep.subr.mxu0 0.0
        %645 = vmatpush1.msra.mxu0 0.0
        %646 = vmatprep.subr.mxu0 0.0
        %647 = vmatpush1.msra.mxu0 0.0
        %648 = vmatprep.subr.mxu0 0.0
        %649 = vmatpush1.msra.mxu0 0.0
        %650 = vmatprep.subr.mxu0 0.0
        %651 = vmatpush1.msra.mxu0 0.0
        %652 = vmatprep.subr.mxu0 0.0
        %653 = vmatpush1.msra.mxu0 0.0
        %654 = vmatprep.subr.mxu0 0.0
        %655 = vmatpush1.msra.mxu0 0.0
        %656 = vmatprep.subr.mxu0 0.0
        %657 = vmatpush1.msra.mxu0 0.0
        %658 = vmatprep.subr.mxu0 0.0
        %659 = vmatpush1.msra.mxu0 0.0
        %660 = vmatprep.subr.mxu0 0.0
        %661 = vmatpush1.msra.mxu0 0.0
        %662 = vmatprep.subr.mxu0 0.0
        %663 = vmatpush1.msra.mxu0 0.0
        %664 = vmatprep.subr.mxu0 0.0
        %665 = vmatpush1.msra.mxu0 0.0
        %666 = vmatprep.subr.mxu0 0.0
        %667 = vmatpush1.msra.mxu0 0.0
        %668 = vmatprep.subr.mxu0 0.0
        %669 = vmatpush1.msra.mxu0 0.0
        %670 = vmatprep.subr.mxu0 0.0
        %671 = vmatpush1.msra.mxu0 0.0
        %672 = vmatprep.subr.mxu0 0.0
        %673 = vmatpush1.msra.mxu0 0.0
        %674 = vmatprep.subr.mxu0 0.0
        %675 = vmatpush1.msra.mxu0 0.0
        %676 = vmatprep.subr.mxu0 0.0
        %677 = vmatpush1.msra.mxu0 0.0
        %678 = vmatprep.subr.mxu0 0.0
        %679 = vmatpush1.msra.mxu0 0.0
        %680 = vmatprep.subr.mxu0 0.0
        %681 = vmatpush1.msra.mxu0 0.0
        %682 = vmatprep.subr.mxu0 0.0
        %683 = vmatpush1.msra.mxu0 0.0
        %684 = vmatprep.subr.mxu0 0.0
        %685 = vmatpush1.msra.mxu0 0.0
        %686 = vmatprep.subr.mxu0 0.0
        %687 = vmatpush1.msra.mxu0 0.0
        %688 = vmatprep.mubr.f32.mxu0 0.0
        %689 = vmatmul.mubr.f32.gmra.mrb[0].mxu0 %v541
        %v690 = vpop.f32.mrb[0].mxu0
        %v691 = vadd.f32 %v622, %v690
        %v692 = vpop.f32.mrb[0].mxu0
        %693 = vdwg.mxu0
        %v694 = vmul.f32 %v691, 1.442695
        %v695 = vpow.pop %v694
        %v696 = vadd.f32 %v695, 1e-06
        %v697 = vrsqrt.pop %v696
        %v698 = vmul.f32 %v696, %v697
        %vm699 = vcmp.eq.f32.partialorder %v696, inf
        %v700 = vsel %vm699, %v696, %v698
        %vm701 = vcmp.eq.f32.partialorder %v696, 0.0
        %v702 = vand.u32 %v696, 2147483648
        %v703 = vsel %vm701, %v702, %v700
        %vm704 = vcmask 64512
        %705 = vst.msk [vmem:[%s321] sm:$0xff] %vm704, %v610
        %s706 = scalar_lea.vmem %s321, 8 [#allocation2]
        %707 = vst.msk [vmem:[%s706] sm:$0xff] %vm704, %v703
        %s708 = sand.u32 %s222, 1
        %s709 = sand.u32 %s222, 1
        %s710 = smul.addr %s709, 16
        %s711 = scalar_lea.vmem [#allocation2], %s710
        // Predicated region
        $region57: #{tpu_custom_call.1} parent=55 // pred_check
          %p712 = pneg %p232
        $region58: #{tpu_custom_call.1} parent=55 // pred_check_branch
          %714 = sbr.rel (%p712) target = $region60
        $region59: #{tpu_custom_call.1} parent=55 // pred_region
          %s715 = smul.addr %s20, 8
          %s716 = scalar_lea.vmem %s9, %s715
          // Predicated region
          $region61: #{tpu_custom_call.1} parent=59 // pred_check
            _
          $region62: #{tpu_custom_call.1} parent=59 // pred_check_branch
            %718 = sbr.rel (0) target = $region64
          $region63: #{tpu_custom_call.1} parent=59 // pred_region
            // Predicated region
            $region65: #{tpu_custom_call.1} parent=63 // pred_check
              _
            $region66: #{tpu_custom_call.1} parent=63 // pred_check_branch
              %720 = sbr.rel (0) target = $region68
            $region67: #{tpu_custom_call.1} parent=63 // pred_region
              // Predicated region
              $region80: #{tpu_custom_call.1} parent=67 // pred_check
                _
              $region81: #{tpu_custom_call.1} parent=67 // pred_check_branch
                %737 = sbr.rel (0) target = $region83
              $region82: #{tpu_custom_call.1} parent=67 // pred_region
                loop: start=0, step=1, limit=1
                $region84: #{tpu_custom_call.1} parent=82 // loop_pre_header
                  _
                $region85: #{tpu_custom_call.1} parent=82 // loop_header
                  %s739 = sphi 0, %s743
                  %p740 = scmp.ge.s32.totalorder %s739, 1
                  %s744 = sphi %s711, %s711
                  %s745 = sphi %s716, %s716
                $region86: #{tpu_custom_call.1} parent=82 // loop_header_branch
                  %742 = sbr.rel (%p740) target = $region90
                $region87: #{tpu_custom_call.1} parent=82 // loop_body
                  %v746 = vld [vmem:[%s744] sm:$0xff]
                  %747 = vst [vmem:[%s745] sm:$0xff] %v746
                  %v748 = vld [vmem:[%s744 + $0x8] sm:$0xff]
                  %749 = vst [vmem:[%s745 + $0x10] sm:$0xff] %v748
                $region88: #{tpu_custom_call.1} parent=82 // loop_footer
                  %s743 = sadd.s32 1, %s739
                $region89: #{tpu_custom_call.1} parent=82 // loop_footer_branch
                  %738 = sbr.rel target = $region85
                $region90: #{tpu_custom_call.1} parent=82 // loop_exit
                  _
              $region83: #{tpu_custom_call.1} parent=67 // pred_fallthru
                _
              // Predicated region
              $region91: #{tpu_custom_call.1} parent=67 // pred_check
                _
              $region92: #{tpu_custom_call.1} parent=67 // pred_check_branch
                %751 = sbr.rel target = $region94
              $region93: #{tpu_custom_call.1} parent=67 // pred_region
                _
              $region94: #{tpu_custom_call.1} parent=67 // pred_fallthru
                _
            $region68: #{tpu_custom_call.1} parent=63 // pred_fallthru
              _
            // Predicated region
            $region69: #{tpu_custom_call.1} parent=63 // pred_check
              _
            $region70: #{tpu_custom_call.1} parent=63 // pred_check_branch
              %722 = sbr.rel target = $region72
            $region71: #{tpu_custom_call.1} parent=63 // pred_region
              loop: start=0, step=1, limit=1
              $region73: #{tpu_custom_call.1} parent=71 // loop_pre_header
                _
              $region74: #{tpu_custom_call.1} parent=71 // loop_header
                %s725 = sphi 0, %s729
                %p726 = scmp.ge.s32.totalorder %s725, 1
                %s730 = sphi %s711, %s711
                %s731 = sphi %s716, %s716
              $region75: #{tpu_custom_call.1} parent=71 // loop_header_branch
                %728 = sbr.rel (%p726) target = $region79
              $region76: #{tpu_custom_call.1} parent=71 // loop_body
                %v732 = vld [vmem:[%s730] sm:$0xff]
                %733 = vst [vmem:[%s731] sm:$0xff] %v732
                %v734 = vld [vmem:[%s730 + $0x8] sm:$0xff]
                %735 = vst [vmem:[%s731 + $0x10] sm:$0xff] %v734
              $region77: #{tpu_custom_call.1} parent=71 // loop_footer
                %s729 = sadd.s32 1, %s725
              $region78: #{tpu_custom_call.1} parent=71 // loop_footer_branch
                %724 = sbr.rel target = $region74
              $region79: #{tpu_custom_call.1} parent=71 // loop_exit
                _
            $region72: #{tpu_custom_call.1} parent=63 // pred_fallthru
              _
          $region64: #{tpu_custom_call.1} parent=59 // pred_fallthru
            _
          %752 = vnop
        $region60: #{tpu_custom_call.1} parent=55 // pred_fallthru
          _
      $region56: #{tpu_custom_call.1} parent=5 // pred_fallthru
        _
      %p753 = scmp.le.s32.totalorder 2, %s15
      // Predicated region
      $region95: #{tpu_custom_call.1} parent=5 // pred_check
        %p754 = pneg %p753
      $region96: #{tpu_custom_call.1} parent=5 // pred_check_branch
        %756 = sbr.rel (%p754) target = $region98
      $region97: #{tpu_custom_call.1} parent=5 // pred_region
        %s757 = ssub.s32 %s15, 2
        // Predicated region
        $region99: #{tpu_custom_call.1} parent=97 // pred_check
          %p758 = pneg %p238
        $region100: #{tpu_custom_call.1} parent=97 // pred_check_branch
          %760 = sbr.rel (%p758) target = $region102
        $region101: #{tpu_custom_call.1} parent=97 // pred_region
          %s761 = sand.u32 %s223, 1
          %s762 = sand.u32 %s223, 1
          %s763 = smul.addr %s762, 16
          %s764 = scalar_lea.vmem [#allocation2], %s763
        $region102: #{tpu_custom_call.1} parent=97 // pred_fallthru
          _
      $region98: #{tpu_custom_call.1} parent=5 // pred_fallthru
        _
    $region6: #{tpu_custom_call.1} parent=1 // loop_footer
      %s19 = sadd.s32 1, %s15
    $region7: #{tpu_custom_call.1} parent=1 // loop_footer_branch
      %14 = sbr.rel target = $region3
    $region8: #{tpu_custom_call.1} parent=1 // loop_exit
      _

</llo_original>
